<compile_context>
chip_gen: v7x
topology: tpu7x:2x2x1
jax: 0.10.0
libtpu: 0.0.40
codegen_flags: <defaults>
</compile_context>

<pallas_src>
import functools

import jax
import jax.numpy as jnp
from jax.experimental import pallas as pl
from jax.experimental.pallas import tpu as pltpu


def fconv_kernel(lens_ref, x_ref, wconv_ref, bias_ref, w1_ref, b1_ref,
                 w2_ref, b2_ref, wp_ref, bp_ref, o_ref, xp_scr, *, T, K, pad):
    """One batch element per grid step.

    lens_ref:  (B,) int32 in SMEM (scalar prefetch) -- valid lengths
    x_ref:     (1, T, C)      input block
    wconv_ref: (K, C, 4C)     conv weights, BN-scale folded in, bf16
    bias_ref:  (1, 4C)        folded conv-bias + BN shift (f32)
    w1/b1:     (4C, 2C), (1, 2C)   SE bottleneck (f32)
    w2/b2:     (2C, 4C), (1, 4C)
    wp/bp:     (4C, C), (1, C)     pointwise conv (f32; gated+cast in kernel)
    o_ref:     (1, T, C)
    xp_scr:    (T+K-1, C) f32 VMEM scratch for the 'same'-padding halo
    """
    b = pl.program_id(0)
    c4 = wconv_ref.shape[2]

    # Build the zero-padded input in VMEM (avoids an HBM-side jnp.pad of x).
    xp_scr[...] = jnp.zeros_like(xp_scr)
    xp_scr[pad:pad + T, :] = x_ref[0]
    xp = xp_scr[...]                                    # (T+K-1, C) f32

    # --- Conv1d(C -> 4C, kernel K, 'same') as K shifted matmuls, bf16 into the MXU ---
    acc = jnp.dot(xp[0:T, :].astype(jnp.bfloat16), wconv_ref[0],
                  preferred_element_type=jnp.float32)
    for k in range(1, K):                               # K is small & static
        acc = acc + jnp.dot(xp[k:k + T, :].astype(jnp.bfloat16), wconv_ref[k],
                            preferred_element_type=jnp.float32)

    # --- folded (conv bias + inference BatchNorm) + ReLU ---
    y = jnp.maximum(acc + bias_ref[...], 0.0)           # (T, 4C) f32

    # --- Squeeze-Excitation (ContextNet style): mean over true length -> MLP -> sigmoid ---
    len_f = jnp.full((1, 1), lens_ref[b], jnp.int32).astype(jnp.float32)
    s = jnp.sum(y, axis=0, keepdims=True) / len_f        # (1, 4C)
    h = jnp.maximum(
        jnp.dot(s, w1_ref[...], preferred_element_type=jnp.float32) + b1_ref[...],
        0.0)                                             # (1, 2C)
    gate = jax.nn.sigmoid(
        jnp.dot(h, w2_ref[...], preferred_element_type=jnp.float32) + b2_ref[...])  # (1, 4C)

    # Fold the gate into the pointwise weight: (y*g) @ Wp == y @ (diag(g) @ Wp).
    # Lane -> sublane move of the gate via iota mask + lane reduction (no XLU transpose).
    rr = jax.lax.broadcasted_iota(jnp.int32, (c4, c4), 0)
    cc = jax.lax.broadcasted_iota(jnp.int32, (c4, c4), 1)
    gate_col = jnp.sum(jnp.where(rr == cc, gate, 0.0), axis=1, keepdims=True)   # (4C, 1)
    wp_scaled = (wp_ref[...] * gate_col).astype(jnp.bfloat16)                   # (4C, C)

    # --- Pointwise Conv1d(4C -> C) as one bf16 matmul ---
    out = jnp.dot(y.astype(jnp.bfloat16), wp_scaled,
                  preferred_element_type=jnp.float32) + bp_ref[...]
    o_ref[0] = out.astype(o_ref.dtype)


def fconv_module(x, mask, params, kernel_size):
    """x: (B, T, C) float32, mask: (B, 1, T) {0,1}. Returns (B, T, C) float32."""
    B, T, C = x.shape
    K = kernel_size
    assert (K - 1) % 2 == 0, "kernel_size must be odd (matches the PyTorch module)"
    pad = (K - 1) // 2
    C4, C2 = 4 * C, 2 * C

    # True lengths from the mask (scalar prefetch, SMEM).
    lengths = jnp.sum(mask[:, 0, :].astype(jnp.int32), axis=1).astype(jnp.int32)   # (B,)

    # Fold inference BatchNorm + conv bias into the conv weight / one bias (f32 math here).
    bnscale, bnshift = params["bnscale"], params["bnshift"]             # (1, 4C)
    wconv_f = (params["wconv"] * bnscale[None, :, :]).astype(jnp.bfloat16)   # (K, C, 4C)
    bias_f = (params["bconv"] * bnscale + bnshift).astype(jnp.float32)       # (1, 4C)

    def full_spec(shape):
        zeros = (0,) * len(shape)
        return pl.BlockSpec(shape, lambda b, lens, z=zeros: z)

    in_specs = [
        pl.BlockSpec((1, T, C), lambda b, lens: (b, 0, 0)),   # x
        full_spec((K, C, C4)),                                # wconv (folded, bf16)
        full_spec((1, C4)),                                   # folded bias
        full_spec((C4, C2)),                                  # w1
        full_spec((1, C2)),                                   # b1
        full_spec((C2, C4)),                                  # w2
        full_spec((1, C4)),                                   # b2
        full_spec((C4, C)),                                   # wp
        full_spec((1, C)),                                    # bp
    ]
    out_spec = pl.BlockSpec((1, T, C), lambda b, lens: (b, 0, 0))

    kern = functools.partial(fconv_kernel, T=T, K=K, pad=pad)
    return pl.pallas_call(
        kern,
        out_shape=jax.ShapeDtypeStruct((B, T, C), jnp.float32),
        grid_spec=pltpu.PrefetchScalarGridSpec(
            num_scalar_prefetch=1,                 # lengths -> SMEM
            grid=(B,),
            in_specs=in_specs,
            out_specs=out_spec,
            scratch_shapes=[pltpu.VMEM((T + K - 1, C), jnp.float32)],
        ),
        compiler_params=pltpu.CompilerParams(
            dimension_semantics=("parallel",),
            vmem_limit_bytes=48 * 1024 * 1024,     # above default scoped limit, < v7x physical
        ),
    )(lengths, x, wconv_f, bias_f,
      params["w1"], params["b1"], params["w2"], params["b2"],
      params["wp"], params["bp"])


def init_params(key, C, K):
    """Deterministic synthetic parameters (PyTorch param shapes mapped to matmul layout)."""
    C4, C2 = 4 * C, 2 * C
    ks = jax.random.split(key, 12)
    sc = 0.1
    eps = 1e-5
    gamma = 1.0 + sc * jax.random.normal(ks[8], (1, C4), jnp.float32)
    beta = sc * jax.random.normal(ks[9], (1, C4), jnp.float32)
    run_mean = sc * jax.random.normal(ks[10], (1, C4), jnp.float32)
    run_var = 1.0 + 0.05 * jax.random.uniform(ks[11], (1, C4), jnp.float32)
    bnscale = gamma / jnp.sqrt(run_var + eps)
    bnshift = beta - run_mean * bnscale
    return {
        # Conv1d(C, 4C, K): torch weight (4C, C, K) -> stored as (K, C, 4C)
        "wconv": sc * jax.random.normal(ks[0], (K, C, C4), jnp.float32),
        "bconv": sc * jax.random.normal(ks[1], (1, C4), jnp.float32),
        "bnscale": bnscale,
        "bnshift": bnshift,
        # SE: Linear(4C -> 2C), Linear(2C -> 4C) (torch (out,in) -> stored (in,out))
        "w1": sc * jax.random.normal(ks[2], (C4, C2), jnp.float32),
        "b1": sc * jax.random.normal(ks[3], (1, C2), jnp.float32),
        "w2": sc * jax.random.normal(ks[4], (C2, C4), jnp.float32),
        "b2": sc * jax.random.normal(ks[5], (1, C4), jnp.float32),
        # Pointwise Conv1d(4C, C, 1): torch (C, 4C, 1) -> stored (4C, C)
        "wp": sc * jax.random.normal(ks[6], (C4, C), jnp.float32),
        "bp": sc * jax.random.normal(ks[7], (1, C), jnp.float32),
    }


def reference(x, mask, p, K):
    """Pure-JAX fp32 reference mirroring the PyTorch forward (inference BN, unfolded params)."""
    B, T, C = x.shape
    pad = (K - 1) // 2
    xp = jnp.pad(x, ((0, 0), (pad, pad), (0, 0)))
    y = jnp.zeros((B, T, 4 * C), jnp.float32)
    for k in range(K):
        y = y + jnp.einsum("btc,cd->btd", xp[:, k:k + T, :], p["wconv"][k])
    y = y + p["bconv"]
    y = jnp.maximum(y * p["bnscale"] + p["bnshift"], 0.0)
    lengths = jnp.sum(mask[:, 0, :].astype(jnp.float32), axis=1)
    s = jnp.sum(y, axis=1) / lengths[:, None]
    h = jnp.maximum(s @ p["w1"] + p["b1"], 0.0)
    g = jax.nn.sigmoid(h @ p["w2"] + p["b2"])
    y = y * g[:, None, :]
    return jnp.einsum("btd,dc->btc", y, p["wp"]) + p["bp"]


if __name__ == "__main__":
    B, T, C, K = 2, 16, 8, 3          # batch, time, channels, conv kernel size
    key = jax.random.PRNGKey(0)
    kx, kp = jax.random.split(key)

    x = jax.random.normal(kx, (B, T, C), jnp.float32)
    valid_lengths = jnp.array([T, T - 4], jnp.int32)
    mask = (jnp.arange(T)[None, :] < valid_lengths[:, None]).astype(jnp.float32)[:, None, :]

    params = init_params(kp, C, K)

    out = fconv_module(x, mask, params, K)
    out = jax.block_until_ready(out)

    ref = reference(x, mask, params, K)
    assert out.shape == (B, T, C)
    max_err = float(jnp.max(jnp.abs(out - ref)))
    # bf16 MXU inputs with fp32 accumulation -> slightly relaxed tolerance vs fp32 reference.
    assert jnp.allclose(out, ref, rtol=5e-2, atol=2e-2), f"mismatch vs JAX reference (max abs err {max_err})"
    print("KERNEL_OK")
</pallas_src>

<mosaic_0001>
module attributes {stable_mosaic.version = 11 : i64} {
  func.func @fconv_kernel(%arg0: i32, %arg1: memref<2xi32, #tpu.memory_space<smem>>, %arg2: memref<1x16x8xf32, #tpu.memory_space<vmem>>, %arg3: memref<3x8x32xbf16, #tpu.memory_space<vmem>>, %arg4: memref<1x32xf32, #tpu.memory_space<vmem>>, %arg5: memref<32x16xf32, #tpu.memory_space<vmem>>, %arg6: memref<1x16xf32, #tpu.memory_space<vmem>>, %arg7: memref<16x32xf32, #tpu.memory_space<vmem>>, %arg8: memref<1x32xf32, #tpu.memory_space<vmem>>, %arg9: memref<32x8xf32, #tpu.memory_space<vmem>>, %arg10: memref<1x8xf32, #tpu.memory_space<vmem>>, %arg11: memref<1x16x8xf32, #tpu.memory_space<vmem>>, %arg12: memref<18x8xf32, #tpu.memory_space<vmem>>) attributes {dimension_semantics = [#tpu.dimension_semantics<parallel>], iteration_bounds = array<i64: 2>, scalar_prefetch = 1 : i64, scratch_operands = 1 : i64, tpu.core_type = #tpu.core_type<tc>, window_params = [{transform_indices = @transform_0, window_bounds = array<i64: 1, 16, 8>}, {pipeline_mode = #tpu.pipeline_mode<synchronous>, transform_indices = @transform_1, window_bounds = array<i64: 3, 8, 32>}, {pipeline_mode = #tpu.pipeline_mode<synchronous>, transform_indices = @transform_2, window_bounds = array<i64: 1, 32>}, {pipeline_mode = #tpu.pipeline_mode<synchronous>, transform_indices = @transform_3, window_bounds = array<i64: 32, 16>}, {pipeline_mode = #tpu.pipeline_mode<synchronous>, transform_indices = @transform_4, window_bounds = array<i64: 1, 16>}, {pipeline_mode = #tpu.pipeline_mode<synchronous>, transform_indices = @transform_5, window_bounds = array<i64: 16, 32>}, {pipeline_mode = #tpu.pipeline_mode<synchronous>, transform_indices = @transform_6, window_bounds = array<i64: 1, 32>}, {pipeline_mode = #tpu.pipeline_mode<synchronous>, transform_indices = @transform_7, window_bounds = array<i64: 32, 8>}, {pipeline_mode = #tpu.pipeline_mode<synchronous>, transform_indices = @transform_8, window_bounds = array<i64: 1, 8>}, {transform_indices = @transform_9, window_bounds = array<i64: 1, 16, 8>}]} {
    %cst = arith.constant 0.000000e+00 : f32
    %0 = vector.broadcast %cst : f32 to vector<18x8xf32>
    %c0 = arith.constant 0 : index
    %c0_0 = arith.constant 0 : index
    %1 = vector.load %arg12[%c0, %c0_0] : memref<18x8xf32, #tpu.memory_space<vmem>>, vector<18x8xf32>
    tpu.vector_store %arg12[%c0, %c0_0], %0 {strides = array<i32>} : memref<18x8xf32, #tpu.memory_space<vmem>>, vector<18x8xf32>,
    %c0_1 = arith.constant 0 : index
    %c0_2 = arith.constant 0 : index
    %c0_3 = arith.constant 0 : index
    %2 = vector.load %arg2[%c0_1, %c0_2, %c0_3] : memref<1x16x8xf32, #tpu.memory_space<vmem>>, vector<1x16x8xf32>
    %3 = vector.shape_cast %2 : vector<1x16x8xf32> to vector<16x8xf32>
    %c1 = arith.constant 1 : index
    %c0_4 = arith.constant 0 : index
    %4 = vector.load %arg12[%c1, %c0_4] : memref<18x8xf32, #tpu.memory_space<vmem>>, vector<16x8xf32>
    tpu.vector_store %arg12[%c1, %c0_4], %3 {strides = array<i32>} : memref<18x8xf32, #tpu.memory_space<vmem>>, vector<16x8xf32>,
    %c0_5 = arith.constant 0 : index
    %c0_6 = arith.constant 0 : index
    %5 = vector.load %arg12[%c0_5, %c0_6] : memref<18x8xf32, #tpu.memory_space<vmem>>, vector<18x8xf32>
    %6 = vector.extract_strided_slice %5 {offsets = [0, 0], sizes = [16, 8], strides = [1, 1]} : vector<18x8xf32> to vector<16x8xf32>
    %7 = arith.truncf %6 : vector<16x8xf32> to vector<16x8xbf16>
    %c0_7 = arith.constant 0 : index
    %c0_8 = arith.constant 0 : index
    %c0_9 = arith.constant 0 : index
    %8 = vector.load %arg3[%c0_7, %c0_8, %c0_9] : memref<3x8x32xbf16, #tpu.memory_space<vmem>>, vector<1x8x32xbf16>
    %9 = vector.shape_cast %8 : vector<1x8x32xbf16> to vector<8x32xbf16>
    %cst_10 = arith.constant dense<0.000000e+00> : vector<16x32xf32>
    %10 = tpu.matmul %7, %9, %cst_10 {dimension_numbers = #tpu.dot_dimension_numbers<[1], [0], [0], [1], [0, 0, 1, 1], [], []>} : vector<16x8xbf16>, vector<8x32xbf16>, vector<16x32xf32> -> vector<16x32xf32>
    %11 = vector.extract_strided_slice %5 {offsets = [1, 0], sizes = [16, 8], strides = [1, 1]} : vector<18x8xf32> to vector<16x8xf32>
    %12 = arith.truncf %11 : vector<16x8xf32> to vector<16x8xbf16>
    %c1_11 = arith.constant 1 : index
    %c0_12 = arith.constant 0 : index
    %c0_13 = arith.constant 0 : index
    %13 = vector.load %arg3[%c1_11, %c0_12, %c0_13] : memref<3x8x32xbf16, #tpu.memory_space<vmem>>, vector<1x8x32xbf16>
    %14 = vector.shape_cast %13 : vector<1x8x32xbf16> to vector<8x32xbf16>
    %cst_14 = arith.constant dense<0.000000e+00> : vector<16x32xf32>
    %15 = tpu.matmul %12, %14, %cst_14 {dimension_numbers = #tpu.dot_dimension_numbers<[1], [0], [0], [1], [0, 0, 1, 1], [], []>} : vector<16x8xbf16>, vector<8x32xbf16>, vector<16x32xf32> -> vector<16x32xf32>
    %16 = arith.addf %10, %15 : vector<16x32xf32>
    %17 = vector.extract_strided_slice %5 {offsets = [2, 0], sizes = [16, 8], strides = [1, 1]} : vector<18x8xf32> to vector<16x8xf32>
    %18 = arith.truncf %17 : vector<16x8xf32> to vector<16x8xbf16>
    %c2 = arith.constant 2 : index
    %c0_15 = arith.constant 0 : index
    %c0_16 = arith.constant 0 : index
    %19 = vector.load %arg3[%c2, %c0_15, %c0_16] : memref<3x8x32xbf16, #tpu.memory_space<vmem>>, vector<1x8x32xbf16>
    %20 = vector.shape_cast %19 : vector<1x8x32xbf16> to vector<8x32xbf16>
    %cst_17 = arith.constant dense<0.000000e+00> : vector<16x32xf32>
    %21 = tpu.matmul %18, %20, %cst_17 {dimension_numbers = #tpu.dot_dimension_numbers<[1], [0], [0], [1], [0, 0, 1, 1], [], []>} : vector<16x8xbf16>, vector<8x32xbf16>, vector<16x32xf32> -> vector<16x32xf32>
    %22 = arith.addf %16, %21 : vector<16x32xf32>
    %c0_18 = arith.constant 0 : index
    %c0_19 = arith.constant 0 : index
    %23 = vector.load %arg4[%c0_18, %c0_19] : memref<1x32xf32, #tpu.memory_space<vmem>>, vector<1x32xf32>
    %24 = vector.broadcast %23 : vector<1x32xf32> to vector<16x32xf32>
    %25 = arith.addf %22, %24 : vector<16x32xf32>
    %cst_20 = arith.constant 0.000000e+00 : f32
    %26 = vector.broadcast %cst_20 : f32 to vector<16x32xf32>
    %27 = arith.maximumf %25, %26 : vector<16x32xf32>
    %28 = arith.index_cast %arg0 : i32 to index
    %29 = memref.load %arg1[%28] : memref<2xi32, #tpu.memory_space<smem>>
    %30 = vector.broadcast %29 : i32 to vector<1x1xi32>
    %31 = arith.sitofp %30 : vector<1x1xi32> to vector<1x1xf32>
    %cst_21 = arith.constant dense<0.000000e+00> : vector<32xf32>
    %32 = vector.multi_reduction <add>, %27, %cst_21 [0] : vector<16x32xf32> to vector<32xf32>
    %33 = vector.shape_cast %32 : vector<32xf32> to vector<1x32xf32>
    %34 = vector.broadcast %31 : vector<1x1xf32> to vector<1x32xf32>
    %35 = arith.divf %33, %34 : vector<1x32xf32>
    %c0_22 = arith.constant 0 : index
    %c0_23 = arith.constant 0 : index
    %36 = vector.load %arg5[%c0_22, %c0_23] : memref<32x16xf32, #tpu.memory_space<vmem>>, vector<32x16xf32>
    %cst_24 = arith.constant dense<0.000000e+00> : vector<1x16xf32>
    %37 = tpu.matmul %35, %36, %cst_24 {dimension_numbers = #tpu.dot_dimension_numbers<[1], [0], [0], [1], [0, 0, 1, 1], [], []>} : vector<1x32xf32>, vector<32x16xf32>, vector<1x16xf32> -> vector<1x16xf32>
    %c0_25 = arith.constant 0 : index
    %c0_26 = arith.constant 0 : index
    %38 = vector.load %arg6[%c0_25, %c0_26] : memref<1x16xf32, #tpu.memory_space<vmem>>, vector<1x16xf32>
    %39 = arith.addf %37, %38 : vector<1x16xf32>
    %cst_27 = arith.constant 0.000000e+00 : f32
    %40 = vector.broadcast %cst_27 : f32 to vector<1x16xf32>
    %41 = arith.maximumf %39, %40 : vector<1x16xf32>
    %c0_28 = arith.constant 0 : index
    %c0_29 = arith.constant 0 : index
    %42 = vector.load %arg7[%c0_28, %c0_29] : memref<16x32xf32, #tpu.memory_space<vmem>>, vector<16x32xf32>
    %cst_30 = arith.constant dense<0.000000e+00> : vector<1x32xf32>
    %43 = tpu.matmul %41, %42, %cst_30 {dimension_numbers = #tpu.dot_dimension_numbers<[1], [0], [0], [1], [0, 0, 1, 1], [], []>} : vector<1x16xf32>, vector<16x32xf32>, vector<1x32xf32> -> vector<1x32xf32>
    %c0_31 = arith.constant 0 : index
    %c0_32 = arith.constant 0 : index
    %44 = vector.load %arg8[%c0_31, %c0_32] : memref<1x32xf32, #tpu.memory_space<vmem>>, vector<1x32xf32>
    %45 = arith.addf %43, %44 : vector<1x32xf32>
    %46 = arith.negf %45 : vector<1x32xf32>
    %47 = math.exp %46 : vector<1x32xf32>
    %cst_33 = arith.constant 1.000000e+00 : f32
    %48 = vector.broadcast %cst_33 : f32 to vector<1x32xf32>
    %49 = arith.addf %48, %47 : vector<1x32xf32>
    %50 = arith.divf %48, %49 : vector<1x32xf32>
    %51 = tpu.iota {dimensions = array<i32: 0>} : vector<32x32xi32>
    %52 = tpu.iota {dimensions = array<i32: 1>} : vector<32x32xi32>
    %53 = arith.cmpi eq, %51, %52 : vector<32x32xi32>
    %cst_34 = arith.constant 0.000000e+00 : f32
    %54 = vector.shape_cast %50 : vector<1x32xf32> to vector<1x32xf32>
    %55 = vector.broadcast %54 : vector<1x32xf32> to vector<32x32xf32>
    %56 = vector.broadcast %cst_34 : f32 to vector<32x32xf32>
    %57 = arith.select %53, %55, %56 : vector<32x32xi1>, vector<32x32xf32>
    %cst_35 = arith.constant dense<0.000000e+00> : vector<32xf32>
    %58 = vector.multi_reduction <add>, %57, %cst_35 [1] : vector<32x32xf32> to vector<32xf32>
    %59 = vector.shape_cast %58 : vector<32xf32> to vector<32x1xf32>
    %c0_36 = arith.constant 0 : index
    %c0_37 = arith.constant 0 : index
    %60 = vector.load %arg9[%c0_36, %c0_37] : memref<32x8xf32, #tpu.memory_space<vmem>>, vector<32x8xf32>
    %61 = vector.broadcast %59 : vector<32x1xf32> to vector<32x8xf32>
    %62 = arith.mulf %60, %61 : vector<32x8xf32>
    %63 = arith.truncf %62 : vector<32x8xf32> to vector<32x8xbf16>
    %64 = arith.truncf %27 : vector<16x32xf32> to vector<16x32xbf16>
    %cst_38 = arith.constant dense<0.000000e+00> : vector<16x8xf32>
    %65 = tpu.matmul %64, %63, %cst_38 {dimension_numbers = #tpu.dot_dimension_numbers<[1], [0], [0], [1], [0, 0, 1, 1], [], []>} : vector<16x32xbf16>, vector<32x8xbf16>, vector<16x8xf32> -> vector<16x8xf32>
    %c0_39 = arith.constant 0 : index
    %c0_40 = arith.constant 0 : index
    %66 = vector.load %arg10[%c0_39, %c0_40] : memref<1x8xf32, #tpu.memory_space<vmem>>, vector<1x8xf32>
    %67 = vector.broadcast %66 : vector<1x8xf32> to vector<16x8xf32>
    %68 = arith.addf %65, %67 : vector<16x8xf32>
    %c0_41 = arith.constant 0 : index
    %c0_42 = arith.constant 0 : index
    %c0_43 = arith.constant 0 : index
    %69 = vector.load %arg11[%c0_41, %c0_42, %c0_43] : memref<1x16x8xf32, #tpu.memory_space<vmem>>, vector<1x16x8xf32>
    %70 = vector.shape_cast %69 : vector<1x16x8xf32> to vector<16x8xf32>
    %71 = vector.shape_cast %68 : vector<16x8xf32> to vector<1x16x8xf32>
    tpu.vector_store %arg11[%c0_41, %c0_42, %c0_43], %71 {strides = array<i32>} : memref<1x16x8xf32, #tpu.memory_space<vmem>>, vector<1x16x8xf32>,
    return
  }
  func.func @transform_0(%arg0: i32, %arg1: memref<2xi32, #tpu.memory_space<smem>>) -> (i32, i32, i32) {
    %c0_i32 = arith.constant 0 : i32
    %c0_i32_0 = arith.constant 0 : i32
    %c0_i32_1 = arith.constant 0 : i32
    return %arg0, %c0_i32, %c0_i32_0 : i32, i32, i32
  }
  func.func @transform_1(%arg0: i32, %arg1: memref<2xi32, #tpu.memory_space<smem>>) -> (i32, i32, i32) {
    %c0_i32 = arith.constant 0 : i32
    %c0_i32_0 = arith.constant 0 : i32
    %c0_i32_1 = arith.constant 0 : i32
    %c0_i32_2 = arith.constant 0 : i32
    return %c0_i32, %c0_i32_0, %c0_i32_1 : i32, i32, i32
  }
  func.func @transform_2(%arg0: i32, %arg1: memref<2xi32, #tpu.memory_space<smem>>) -> (i32, i32) {
    %c0_i32 = arith.constant 0 : i32
    %c0_i32_0 = arith.constant 0 : i32
    %c0_i32_1 = arith.constant 0 : i32
    return %c0_i32, %c0_i32_0 : i32, i32
  }
  func.func @transform_3(%arg0: i32, %arg1: memref<2xi32, #tpu.memory_space<smem>>) -> (i32, i32) {
    %c0_i32 = arith.constant 0 : i32
    %c0_i32_0 = arith.constant 0 : i32
    %c0_i32_1 = arith.constant 0 : i32
    return %c0_i32, %c0_i32_0 : i32, i32
  }
  func.func @transform_4(%arg0: i32, %arg1: memref<2xi32, #tpu.memory_space<smem>>) -> (i32, i32) {
    %c0_i32 = arith.constant 0 : i32
    %c0_i32_0 = arith.constant 0 : i32
    %c0_i32_1 = arith.constant 0 : i32
    return %c0_i32, %c0_i32_0 : i32, i32
  }
  func.func @transform_5(%arg0: i32, %arg1: memref<2xi32, #tpu.memory_space<smem>>) -> (i32, i32) {
    %c0_i32 = arith.constant 0 : i32
    %c0_i32_0 = arith.constant 0 : i32
    %c0_i32_1 = arith.constant 0 : i32
    return %c0_i32, %c0_i32_0 : i32, i32
  }
  func.func @transform_6(%arg0: i32, %arg1: memref<2xi32, #tpu.memory_space<smem>>) -> (i32, i32) {
    %c0_i32 = arith.constant 0 : i32
    %c0_i32_0 = arith.constant 0 : i32
    %c0_i32_1 = arith.constant 0 : i32
    return %c0_i32, %c0_i32_0 : i32, i32
  }
  func.func @transform_7(%arg0: i32, %arg1: memref<2xi32, #tpu.memory_space<smem>>) -> (i32, i32) {
    %c0_i32 = arith.constant 0 : i32
    %c0_i32_0 = arith.constant 0 : i32
    %c0_i32_1 = arith.constant 0 : i32
    return %c0_i32, %c0_i32_0 : i32, i32
  }
  func.func @transform_8(%arg0: i32, %arg1: memref<2xi32, #tpu.memory_space<smem>>) -> (i32, i32) {
    %c0_i32 = arith.constant 0 : i32
    %c0_i32_0 = arith.constant 0 : i32
    %c0_i32_1 = arith.constant 0 : i32
    return %c0_i32, %c0_i32_0 : i32, i32
  }
  func.func @transform_9(%arg0: i32, %arg1: memref<2xi32, #tpu.memory_space<smem>>) -> (i32, i32, i32) {
    %c0_i32 = arith.constant 0 : i32
    %c0_i32_0 = arith.constant 0 : i32
    %c0_i32_1 = arith.constant 0 : i32
    return %arg0, %c0_i32, %c0_i32_0 : i32, i32, i32
  }
}

</mosaic_0001>

<llo_original>
// kernel: tpu_custom_call.1
$region0: #{tpu_custom_call.1}
  #allocation0 [shape = 'u32[]', space=smem, size = 0x4, offset = 0x4, fixed_abs, tag = 'smem constant byte address 0x4 - core index']
  #allocation1 [shape = 'u32[144,128]{1,0:T(1,128)}', space=vmem, size = 0x12000, scoped, tag = 'internal scratch']
  #allocation2 [shape = 'f32[18,8]{1,0:T(8,128)}', space=vmem, size = 0x3000, scoped, tag = 'scratch operand']
  #allocation3 [shape = 's32[1]{0}', space=sflag, size = 0x4, scoped, tag = 'scoped memory for tpu_custom_call.1']
  #allocation4 [shape = 'u8[512]{0}', space=smem, size = 0x200, scoped, tag = 'prefetched SMEM operand 0']
  %s0 = inlined_call_operand.vmem [shape: s32[2], index: 0, kind: input, shape index: {}]
  %s1 = inlined_call_operand.vmem [shape: f32[2,16,8], index: 1, kind: input, shape index: {}]
  %s2 = inlined_call_operand.vmem [shape: bf16[3,8,32], index: 2, kind: input, shape index: {}]
  %s3 = inlined_call_operand.vmem [shape: f32[1,32], index: 3, kind: input, shape index: {}]
  %s4 = inlined_call_operand.vmem [shape: f32[32,16], index: 4, kind: input, shape index: {}]
  %s5 = inlined_call_operand.vmem [shape: f32[1,16], index: 5, kind: input, shape index: {}]
  %s6 = inlined_call_operand.vmem [shape: f32[16,32], index: 6, kind: input, shape index: {}]
  %s7 = inlined_call_operand.vmem [shape: f32[1,32], index: 7, kind: input, shape index: {}]
  %s8 = inlined_call_operand.vmem [shape: f32[32,8], index: 8, kind: input, shape index: {}]
  %s9 = inlined_call_operand.vmem [shape: f32[1,8], index: 9, kind: input, shape index: {}]
  %s10 = inlined_call_operand.vmem [shape: f32[2,16,8], index: 10, kind: output, shape index: {}]
  %s11 = sld [smem:[#allocation0]]
  $region69: #{tpu_custom_call.1} parent=0
    _
  %s13 = ssub.s32 1, %s11
  %s14 = scalar_select 0, %s13, %s11
  %s15 = sshll.u32 %s0, 4
  %s16 = int_to_ptr.vmem [resolvable:$true] %s15
  %18 = dma.vmem_to_smem %s16, 16, [#allocation4], [#allocation3]
  %19 = dma.done [#allocation3], 16
  %20 = sfence
  loop: start=0, step=1, limit=4
  $region2: #{tpu_custom_call.1} parent=0 // loop_pre_header
    _
  $region3: #{tpu_custom_call.1} parent=0 // loop_header
    %s22 = sphi 0, %s26
    %p23 = scmp.ge.s32.totalorder %s22, 4
    %s32 = sphi 0, %s34
    %s35 = sphi 0, %s32
    %s36 = sphi 0, %s35
    %s52 = sphi 0, %s36
    %s56 = sphi 0, %s56
    %s58 = sphi 0, %s56
    %s59 = sphi 0, %s58
    %s73 = sphi 0, %s59
    %s77 = sphi 0, %s77
    %s79 = sphi 0, %s77
    %s80 = sphi 0, %s79
    %s94 = sphi 0, %s80
    %s98 = sphi 0, %s98
    %s100 = sphi 0, %s98
    %s101 = sphi 0, %s100
    %s115 = sphi 0, %s101
    %s119 = sphi 0, %s119
    %s121 = sphi 0, %s119
    %s122 = sphi 0, %s121
    %s136 = sphi 0, %s122
    %s140 = sphi 0, %s140
    %s142 = sphi 0, %s140
    %s143 = sphi 0, %s142
    %s157 = sphi 0, %s143
    %s161 = sphi 0, %s161
    %s163 = sphi 0, %s161
    %s164 = sphi 0, %s163
    %s178 = sphi 0, %s164
    %s182 = sphi 0, %s182
    %s184 = sphi 0, %s182
    %s185 = sphi 0, %s184
    %s199 = sphi 0, %s185
    %s203 = sphi 0, %s203
    %s205 = sphi 0, %s203
    %s206 = sphi 0, %s205
    %s220 = sphi 0, %s206
    %s226 = sphi 0, %s228
    %s229 = sphi 0, %s226
    %s230 = sphi 0, %s229
    %s246 = sphi 0, %s230
  $region4: #{tpu_custom_call.1} parent=0 // loop_header_branch
    %25 = sbr.rel (%p23) target = $region8
  $region5: #{tpu_custom_call.1} parent=0 // loop_body
    %s27 = ssub.s32 %s22, 1
    %s28 = ssub.s32 %s22, 2
    %s29 = sadd.s32 %s22, 1
    %s30 = ssub.s32 %s22, %s29
    %p31 = scmp.eq.s32.totalorder %s30, 0
    %s33 = sadd.s32 %s32, 1
    %s34 = scalar_select %p31, %s32, %s33
    %p37 = pneg %p31
    %p38 = scmp.eq.s32.totalorder %s22, 1
    %p39 = por %p37, %p38
    %p40 = scmp.ne.s32.totalorder %s32, %s35
    %p41 = scmp.eq.s32.totalorder %s22, 0
    %p42 = por %p40, %p41
    %p43 = scmp.ne.s32.totalorder %s32, %s35
    %p44 = scmp.eq.s32.totalorder %s27, 1
    %p45 = por %p43, %p44
    %p46 = scmp.ne.s32.totalorder %s35, %s36
    %p47 = scmp.eq.s32.totalorder %s27, 0
    %p48 = por %p46, %p47
    %p49 = scmp.ne.s32.totalorder %s35, %s36
    %p50 = scmp.eq.s32.totalorder %s28, 1
    %p51 = por %p49, %p50
    %p53 = scmp.ne.s32.totalorder %s36, %s52
    %p54 = scmp.eq.s32.totalorder %s28, 0
    %p55 = por %p53, %p54
    %s57 = sadd.s32 %s56, 1
    %p60 = scmp.eq.s32.totalorder %s22, 1
    %p61 = scmp.ne.s32.totalorder %s56, %s58
    %p62 = scmp.eq.s32.totalorder %s22, 0
    %p63 = por %p61, %p62
    %p64 = scmp.ne.s32.totalorder %s56, %s58
    %p65 = scmp.eq.s32.totalorder %s27, 1
    %p66 = por %p64, %p65
    %p67 = scmp.ne.s32.totalorder %s58, %s59
    %p68 = scmp.eq.s32.totalorder %s27, 0
    %p69 = por %p67, %p68
    %p70 = scmp.ne.s32.totalorder %s58, %s59
    %p71 = scmp.eq.s32.totalorder %s28, 1
    %p72 = por %p70, %p71
    %p74 = scmp.ne.s32.totalorder %s59, %s73
    %p75 = scmp.eq.s32.totalorder %s28, 0
    %p76 = por %p74, %p75
    %s78 = sadd.s32 %s77, 1
    %p81 = scmp.eq.s32.totalorder %s22, 1
    %p82 = scmp.ne.s32.totalorder %s77, %s79
    %p83 = scmp.eq.s32.totalorder %s22, 0
    %p84 = por %p82, %p83
    %p85 = scmp.ne.s32.totalorder %s77, %s79
    %p86 = scmp.eq.s32.totalorder %s27, 1
    %p87 = por %p85, %p86
    %p88 = scmp.ne.s32.totalorder %s79, %s80
    %p89 = scmp.eq.s32.totalorder %s27, 0
    %p90 = por %p88, %p89
    %p91 = scmp.ne.s32.totalorder %s79, %s80
    %p92 = scmp.eq.s32.totalorder %s28, 1
    %p93 = por %p91, %p92
    %p95 = scmp.ne.s32.totalorder %s80, %s94
    %p96 = scmp.eq.s32.totalorder %s28, 0
    %p97 = por %p95, %p96
    %s99 = sadd.s32 %s98, 1
    %p102 = scmp.eq.s32.totalorder %s22, 1
    %p103 = scmp.ne.s32.totalorder %s98, %s100
    %p104 = scmp.eq.s32.totalorder %s22, 0
    %p105 = por %p103, %p104
    %p106 = scmp.ne.s32.totalorder %s98, %s100
    %p107 = scmp.eq.s32.totalorder %s27, 1
    %p108 = por %p106, %p107
    %p109 = scmp.ne.s32.totalorder %s100, %s101
    %p110 = scmp.eq.s32.totalorder %s27, 0
    %p111 = por %p109, %p110
    %p112 = scmp.ne.s32.totalorder %s100, %s101
    %p113 = scmp.eq.s32.totalorder %s28, 1
    %p114 = por %p112, %p113
    %p116 = scmp.ne.s32.totalorder %s101, %s115
    %p117 = scmp.eq.s32.totalorder %s28, 0
    %p118 = por %p116, %p117
    %s120 = sadd.s32 %s119, 1
    %p123 = scmp.eq.s32.totalorder %s22, 1
    %p124 = scmp.ne.s32.totalorder %s119, %s121
    %p125 = scmp.eq.s32.totalorder %s22, 0
    %p126 = por %p124, %p125
    %p127 = scmp.ne.s32.totalorder %s119, %s121
    %p128 = scmp.eq.s32.totalorder %s27, 1
    %p129 = por %p127, %p128
    %p130 = scmp.ne.s32.totalorder %s121, %s122
    %p131 = scmp.eq.s32.totalorder %s27, 0
    %p132 = por %p130, %p131
    %p133 = scmp.ne.s32.totalorder %s121, %s122
    %p134 = scmp.eq.s32.totalorder %s28, 1
    %p135 = por %p133, %p134
    %p137 = scmp.ne.s32.totalorder %s122, %s136
    %p138 = scmp.eq.s32.totalorder %s28, 0
    %p139 = por %p137, %p138
    %s141 = sadd.s32 %s140, 1
    %p144 = scmp.eq.s32.totalorder %s22, 1
    %p145 = scmp.ne.s32.totalorder %s140, %s142
    %p146 = scmp.eq.s32.totalorder %s22, 0
    %p147 = por %p145, %p146
    %p148 = scmp.ne.s32.totalorder %s140, %s142
    %p149 = scmp.eq.s32.totalorder %s27, 1
    %p150 = por %p148, %p149
    %p151 = scmp.ne.s32.totalorder %s142, %s143
    %p152 = scmp.eq.s32.totalorder %s27, 0
    %p153 = por %p151, %p152
    %p154 = scmp.ne.s32.totalorder %s142, %s143
    %p155 = scmp.eq.s32.totalorder %s28, 1
    %p156 = por %p154, %p155
    %p158 = scmp.ne.s32.totalorder %s143, %s157
    %p159 = scmp.eq.s32.totalorder %s28, 0
    %p160 = por %p158, %p159
    %s162 = sadd.s32 %s161, 1
    %p165 = scmp.eq.s32.totalorder %s22, 1
    %p166 = scmp.ne.s32.totalorder %s161, %s163
    %p167 = scmp.eq.s32.totalorder %s22, 0
    %p168 = por %p166, %p167
    %p169 = scmp.ne.s32.totalorder %s161, %s163
    %p170 = scmp.eq.s32.totalorder %s27, 1
    %p171 = por %p169, %p170
    %p172 = scmp.ne.s32.totalorder %s163, %s164
    %p173 = scmp.eq.s32.totalorder %s27, 0
    %p174 = por %p172, %p173
    %p175 = scmp.ne.s32.totalorder %s163, %s164
    %p176 = scmp.eq.s32.totalorder %s28, 1
    %p177 = por %p175, %p176
    %p179 = scmp.ne.s32.totalorder %s164, %s178
    %p180 = scmp.eq.s32.totalorder %s28, 0
    %p181 = por %p179, %p180
    %s183 = sadd.s32 %s182, 1
    %p186 = scmp.eq.s32.totalorder %s22, 1
    %p187 = scmp.ne.s32.totalorder %s182, %s184
    %p188 = scmp.eq.s32.totalorder %s22, 0
    %p189 = por %p187, %p188
    %p190 = scmp.ne.s32.totalorder %s182, %s184
    %p191 = scmp.eq.s32.totalorder %s27, 1
    %p192 = por %p190, %p191
    %p193 = scmp.ne.s32.totalorder %s184, %s185
    %p194 = scmp.eq.s32.totalorder %s27, 0
    %p195 = por %p193, %p194
    %p196 = scmp.ne.s32.totalorder %s184, %s185
    %p197 = scmp.eq.s32.totalorder %s28, 1
    %p198 = por %p196, %p197
    %p200 = scmp.ne.s32.totalorder %s185, %s199
    %p201 = scmp.eq.s32.totalorder %s28, 0
    %p202 = por %p200, %p201
    %s204 = sadd.s32 %s203, 1
    %p207 = scmp.eq.s32.totalorder %s22, 1
    %p208 = scmp.ne.s32.totalorder %s203, %s205
    %p209 = scmp.eq.s32.totalorder %s22, 0
    %p210 = por %p208, %p209
    %p211 = scmp.ne.s32.totalorder %s203, %s205
    %p212 = scmp.eq.s32.totalorder %s27, 1
    %p213 = por %p211, %p212
    %p214 = scmp.ne.s32.totalorder %s205, %s206
    %p215 = scmp.eq.s32.totalorder %s27, 0
    %p216 = por %p214, %p215
    %p217 = scmp.ne.s32.totalorder %s205, %s206
    %p218 = scmp.eq.s32.totalorder %s28, 1
    %p219 = por %p217, %p218
    %p221 = scmp.ne.s32.totalorder %s206, %s220
    %p222 = scmp.eq.s32.totalorder %s28, 0
    %p223 = por %p221, %p222
    %s224 = ssub.s32 %s22, %s29
    %p225 = scmp.eq.s32.totalorder %s224, 0
    %s227 = sadd.s32 %s226, 1
    %s228 = scalar_select %p225, %s226, %s227
    %p231 = pneg %p225
    %p232 = scmp.eq.s32.totalorder %s22, 1
    %p233 = por %p231, %p232
    %p234 = scmp.ne.s32.totalorder %s226, %s229
    %p235 = scmp.eq.s32.totalorder %s22, 0
    %p236 = por %p234, %p235
    %p237 = scmp.ne.s32.totalorder %s226, %s229
    %p238 = scmp.eq.s32.totalorder %s27, 1
    %p239 = por %p237, %p238
    %p240 = scmp.ne.s32.totalorder %s229, %s230
    %p241 = scmp.eq.s32.totalorder %s27, 0
    %p242 = por %p240, %p241
    %p243 = scmp.ne.s32.totalorder %s229, %s230
    %p244 = scmp.eq.s32.totalorder %s28, 1
    %p245 = por %p243, %p244
    %p247 = scmp.ne.s32.totalorder %s230, %s246
    %p248 = scmp.eq.s32.totalorder %s28, 0
    %p249 = por %p247, %p248
    %p250 = scmp.le.s32.totalorder 1, %s22
    %p251 = scmp.lt.s32.totalorder %s22, 3
    %p252 = pnand %p250, %p251
    %p253 = pneg %p252
    // Predicated region
    $region9: #{tpu_custom_call.1} parent=5 // pred_check
      _
    $region10: #{tpu_custom_call.1} parent=5 // pred_check_branch
      %255 = sbr.rel (%p252) target = $region12
    $region11: #{tpu_custom_call.1} parent=5 // pred_region
      %s256 = ssub.s32 %s22, 1
      // Predicated region
      $region13: #{tpu_custom_call.1} parent=11 // pred_check
        %p257 = pneg %p69
      $region14: #{tpu_custom_call.1} parent=11 // pred_check_branch
        %259 = sbr.rel (%p257) target = $region16
      $region15: #{tpu_custom_call.1} parent=11 // pred_region
        _
      $region16: #{tpu_custom_call.1} parent=11 // pred_fallthru
        _
      // Predicated region
      $region17: #{tpu_custom_call.1} parent=11 // pred_check
        %p260 = pneg %p90
      $region18: #{tpu_custom_call.1} parent=11 // pred_check_branch
        %262 = sbr.rel (%p260) target = $region20
      $region19: #{tpu_custom_call.1} parent=11 // pred_region
        _
      $region20: #{tpu_custom_call.1} parent=11 // pred_fallthru
        _
      // Predicated region
      $region21: #{tpu_custom_call.1} parent=11 // pred_check
        %p263 = pneg %p111
      $region22: #{tpu_custom_call.1} parent=11 // pred_check_branch
        %265 = sbr.rel (%p263) target = $region24
      $region23: #{tpu_custom_call.1} parent=11 // pred_region
        _
      $region24: #{tpu_custom_call.1} parent=11 // pred_fallthru
        _
      // Predicated region
      $region25: #{tpu_custom_call.1} parent=11 // pred_check
        %p266 = pneg %p132
      $region26: #{tpu_custom_call.1} parent=11 // pred_check_branch
        %268 = sbr.rel (%p266) target = $region28
      $region27: #{tpu_custom_call.1} parent=11 // pred_region
        _
      $region28: #{tpu_custom_call.1} parent=11 // pred_fallthru
        _
      // Predicated region
      $region29: #{tpu_custom_call.1} parent=11 // pred_check
        %p269 = pneg %p153
      $region30: #{tpu_custom_call.1} parent=11 // pred_check_branch
        %271 = sbr.rel (%p269) target = $region32
      $region31: #{tpu_custom_call.1} parent=11 // pred_region
        _
      $region32: #{tpu_custom_call.1} parent=11 // pred_fallthru
        _
      // Predicated region
      $region33: #{tpu_custom_call.1} parent=11 // pred_check
        %p272 = pneg %p174
      $region34: #{tpu_custom_call.1} parent=11 // pred_check_branch
        %274 = sbr.rel (%p272) target = $region36
      $region35: #{tpu_custom_call.1} parent=11 // pred_region
        _
      $region36: #{tpu_custom_call.1} parent=11 // pred_fallthru
        _
      // Predicated region
      $region37: #{tpu_custom_call.1} parent=11 // pred_check
        %p275 = pneg %p195
      $region38: #{tpu_custom_call.1} parent=11 // pred_check_branch
        %277 = sbr.rel (%p275) target = $region40
      $region39: #{tpu_custom_call.1} parent=11 // pred_region
        _
      $region40: #{tpu_custom_call.1} parent=11 // pred_fallthru
        _
      // Predicated region
      $region41: #{tpu_custom_call.1} parent=11 // pred_check
        %p278 = pneg %p216
      $region42: #{tpu_custom_call.1} parent=11 // pred_check_branch
        %280 = sbr.rel (%p278) target = $region44
      $region43: #{tpu_custom_call.1} parent=11 // pred_region
        _
      $region44: #{tpu_custom_call.1} parent=11 // pred_fallthru
        _
    $region12: #{tpu_custom_call.1} parent=5 // pred_fallthru
      _
    %p281 = scmp.lt.s32.totalorder %s22, 2
    // Predicated region
    $region45: #{tpu_custom_call.1} parent=5 // pred_check
      %p282 = pneg %p281
    $region46: #{tpu_custom_call.1} parent=5 // pred_check_branch
      %284 = sbr.rel (%p282) target = $region48
    $region47: #{tpu_custom_call.1} parent=5 // pred_region
      // Predicated region
      $region49: #{tpu_custom_call.1} parent=47 // pred_check
        %p285 = pneg %p42
      $region50: #{tpu_custom_call.1} parent=47 // pred_check_branch
        %287 = sbr.rel (%p285) target = $region52
      $region51: #{tpu_custom_call.1} parent=47 // pred_region
        %p288 = scmp.lt.s32.totalorder %s22, 1
        %s289 = scalar_select %p288, %s22, 1
        %s290 = smul.addr %s289, 2
        %s291 = smul.addr %s290, 8
        %s292 = scalar_lea.vmem %s1, %s291
      $region52: #{tpu_custom_call.1} parent=47 // pred_fallthru
        _
    $region48: #{tpu_custom_call.1} parent=5 // pred_fallthru
      _
    %p293 = scmp.le.s32.totalorder 1, %s22
    %p294 = scmp.lt.s32.totalorder %s22, 3
    %p295 = pnand %p293, %p294
    %p296 = pneg %p295
    // Predicated region
    $region53: #{tpu_custom_call.1} parent=5 // pred_check
      _
    $region54: #{tpu_custom_call.1} parent=5 // pred_check_branch
      %298 = sbr.rel (%p295) target = $region56
    $region55: #{tpu_custom_call.1} parent=5 // pred_region
      %s299 = ssub.s32 %s22, 1
      %p300 = scmp.lt.s32.totalorder %s27, 1
      %s301 = scalar_select %p300, %s27, 1
      %s302 = smul.addr %s301, 2
      %s303 = smul.addr %s302, 8
      %s304 = scalar_lea.vmem %s1, %s303
      %p305 = pneg %p48
      %p306 = pneg %p45
      %p307 = pneg %p69
      %p308 = pneg %p66
      %p309 = pneg %p90
      %p310 = pneg %p87
      %p311 = pneg %p111
      %p312 = pneg %p108
      %p313 = pneg %p132
      %p314 = pneg %p129
      %p315 = pneg %p153
      %p316 = pneg %p150
      %p317 = pneg %p174
      %p318 = pneg %p171
      %p319 = pneg %p195
      %p320 = pneg %p192
      %p321 = pneg %p216
      %p322 = pneg %p213
      %p323 = pneg %p242
      %p324 = pneg %p239
      %p325 = scmp.lt.s32.totalorder %s27, 1
      %s326 = scalar_select %p325, %s27, 1
      %s327 = smul.addr %s326, 2
      %s328 = smul.addr %s327, 8
      %s329 = scalar_lea.vmem %s10, %s328
      %p330 = scmp.lt.s32.totalorder %s27, 1
      %s331 = scalar_select %p330, %s27, 1
      %s332 = smul.addr %s331, 2
      %s333 = smul.addr %s332, 8
      %s334 = scalar_lea.vmem %s1, %s333
      %p335 = scmp.lt.s32.totalorder %s27, 1
      %s336 = scalar_select %p335, %s27, 1
      %s337 = smul.addr %s336, 2
      %s338 = smul.addr %s337, 8
      %s339 = scalar_lea.vmem %s10, %s338
      %vm341 = vcmask 64512
      %342 = vst.msk [vmem:[#allocation2] sm:$0xff] %vm341, 0.0
      %343 = vst.msk [vmem:[#allocation2 + $0x8] sm:$0xff] %vm341, 0.0
      %vm344 = vcmask 58368
      %345 = vst.msk [vmem:[#allocation2 + $0x10] sm:$0x3] %vm344, 0.0
      %v346 = vld [vmem:[%s334] sm:$0xff]
      %v347 = vld [vmem:[%s334 + $0x8] sm:$0xff]
      %348 = vst.msk [vmem:[#allocation2 + $0x1] sm:$0xff] %vm341, %v346
      %349 = vst.msk [vmem:[#allocation2 + $0x9] sm:$0xff] %vm341, %v347
      %v350 = vld [vmem:[#allocation2] sm:$0xff]
      %v351 = vld [vmem:[#allocation2 + $0x8] sm:$0xff]
      %v352 = vld [vmem:[#allocation2 + $0x10] sm:$0x3]
      %v353 = vpack.c.bf16 %v351, %v350
      %v354 = vld [vmem:[%s2] sm:$0xf]
      %v355 = vpack.c.bf16 %v352, %v352
      %s356 = scalar_lea.vmem %s2, 4
      %v357 = vld [vmem:[%s356] sm:$0xf]
      %vm358 = vsmask.f32 7424
      %v360 = vshrl.u32 %v353, 16
      %v362 = vshll.u32 %v353, 16
      %v364 = vrot.slane %v362, 1
      %v365 = vor.u32 %v360, %v364
      %v367 = vshll.u32 %v355, 16
      %v369 = vrot.slane %v367, 1
      %v370 = vsel %vm358, %v365, %v369
      %v372 = vsel %vm341, %v370, 0
      %vm374 = vcmask 1043456
      %v376 = vsel %vm374, %v357, 0
      %378 = vmatprep.subr.bf16.mxu0 0
      %379 = vmatpush1.bf16.msra.mxu0 %v376
      %380 = vmatprep.subr.bf16.mxu0 0
      %381 = vmatpush1.bf16.msra.mxu0 0
      %382 = vmatprep.subr.bf16.mxu0 0
      %383 = vmatpush1.bf16.msra.mxu0 0
      %384 = vmatprep.subr.bf16.mxu0 0
      %385 = vmatpush1.bf16.msra.mxu0 0
      %386 = vmatprep.subr.bf16.mxu0 0
      %387 = vmatpush1.bf16.msra.mxu0 0
      %388 = vmatprep.subr.bf16.mxu0 0
      %389 = vmatpush1.bf16.msra.mxu0 0
      %390 = vmatprep.subr.bf16.mxu0 0
      %391 = vmatpush1.bf16.msra.mxu0 0
      %392 = vmatprep.subr.bf16.mxu0 0
      %393 = vmatpush1.bf16.msra.mxu0 0
      %394 = vmatprep.subr.bf16.mxu0 0
      %395 = vmatpush1.bf16.msra.mxu0 0
      %396 = vmatprep.subr.bf16.mxu0 0
      %397 = vmatpush1.bf16.msra.mxu0 0
      %398 = vmatprep.subr.bf16.mxu0 0
      %399 = vmatpush1.bf16.msra.mxu0 0
      %400 = vmatprep.subr.bf16.mxu0 0
      %401 = vmatpush1.bf16.msra.mxu0 0
      %402 = vmatprep.subr.bf16.mxu0 0
      %403 = vmatpush1.bf16.msra.mxu0 0
      %404 = vmatprep.subr.bf16.mxu0 0
      %405 = vmatpush1.bf16.msra.mxu0 0
      %406 = vmatprep.subr.bf16.mxu0 0
      %407 = vmatpush1.bf16.msra.mxu0 0
      %408 = vmatprep.subr.bf16.mxu0 0
      %409 = vmatpush1.bf16.msra.mxu0 0
      %410 = vmatprep.mubr.bf16.mxu0 0
      %411 = vmatmul.mubr.bf16.gmra.mrb[0].mxu0 %v372
      %v412 = vpop.f32.mrb[0].mxu0
      %v413 = vadd.f32 0.0, %v412
      %v414 = vpop.f32.mrb[0].mxu0
      %v415 = vpop.f32.mrb[0].mxu0
      %v416 = vadd.f32 0.0, %v415
      %v417 = vpop.f32.mrb[0].mxu0
      %418 = vdwg.mxu0
      %v419 = vsel %vm341, %v353, 0
      %v422 = vsel %vm374, %v354, 0
      %424 = vmatprep.subr.bf16.mxu0 0
      %425 = vmatpush1.bf16.msra.mxu0 %v422
      %426 = vmatprep.subr.bf16.mxu0 0
      %427 = vmatpush1.bf16.msra.mxu0 0
      %428 = vmatprep.subr.bf16.mxu0 0
      %429 = vmatpush1.bf16.msra.mxu0 0
      %430 = vmatprep.subr.bf16.mxu0 0
      %431 = vmatpush1.bf16.msra.mxu0 0
      %432 = vmatprep.subr.bf16.mxu0 0
      %433 = vmatpush1.bf16.msra.mxu0 0
      %434 = vmatprep.subr.bf16.mxu0 0
      %435 = vmatpush1.bf16.msra.mxu0 0
      %436 = vmatprep.subr.bf16.mxu0 0
      %437 = vmatpush1.bf16.msra.mxu0 0
      %438 = vmatprep.subr.bf16.mxu0 0
      %439 = vmatpush1.bf16.msra.mxu0 0
      %440 = vmatprep.subr.bf16.mxu0 0
      %441 = vmatpush1.bf16.msra.mxu0 0
      %442 = vmatprep.subr.bf16.mxu0 0
      %443 = vmatpush1.bf16.msra.mxu0 0
      %444 = vmatprep.subr.bf16.mxu0 0
      %445 = vmatpush1.bf16.msra.mxu0 0
      %446 = vmatprep.subr.bf16.mxu0 0
      %447 = vmatpush1.bf16.msra.mxu0 0
      %448 = vmatprep.subr.bf16.mxu0 0
      %449 = vmatpush1.bf16.msra.mxu0 0
      %450 = vmatprep.subr.bf16.mxu0 0
      %451 = vmatpush1.bf16.msra.mxu0 0
      %452 = vmatprep.subr.bf16.mxu0 0
      %453 = vmatpush1.bf16.msra.mxu0 0
      %454 = vmatprep.subr.bf16.mxu0 0
      %455 = vmatpush1.bf16.msra.mxu0 0
      %456 = vmatprep.mubr.bf16.mxu0 0
      %457 = vmatmul.mubr.bf16.gmra.mrb[0].mxu0 %v419
      %v458 = vpop.f32.mrb[0].mxu0
      %v459 = vadd.f32 %v413, %v458
      %v460 = vpop.f32.mrb[0].mxu0
      %v461 = vpop.f32.mrb[0].mxu0
      %v462 = vadd.f32 %v416, %v461
      %v463 = vpop.f32.mrb[0].mxu0
      %464 = vdwg.mxu0
      %s465 = scalar_lea.vmem %s2, 8
      %v466 = vld [vmem:[%s465] sm:$0xf]
      %vm469 = vcmask 1046528
      %v470 = vrot.slane %v353, 1
      %v471 = vrot.slane %v355, 1
      %v472 = vsel %vm469, %v470, %v471
      %v474 = vsel %vm341, %v472, 0
      %v477 = vsel %vm374, %v466, 0
      %479 = vmatprep.subr.bf16.mxu0 0
      %480 = vmatpush1.bf16.msra.mxu0 %v477
      %481 = vmatprep.subr.bf16.mxu0 0
      %482 = vmatpush1.bf16.msra.mxu0 0
      %483 = vmatprep.subr.bf16.mxu0 0
      %484 = vmatpush1.bf16.msra.mxu0 0
      %485 = vmatprep.subr.bf16.mxu0 0
      %486 = vmatpush1.bf16.msra.mxu0 0
      %487 = vmatprep.subr.bf16.mxu0 0
      %488 = vmatpush1.bf16.msra.mxu0 0
      %489 = vmatprep.subr.bf16.mxu0 0
      %490 = vmatpush1.bf16.msra.mxu0 0
      %491 = vmatprep.subr.bf16.mxu0 0
      %492 = vmatpush1.bf16.msra.mxu0 0
      %493 = vmatprep.subr.bf16.mxu0 0
      %494 = vmatpush1.bf16.msra.mxu0 0
      %495 = vmatprep.subr.bf16.mxu0 0
      %496 = vmatpush1.bf16.msra.mxu0 0
      %497 = vmatprep.subr.bf16.mxu0 0
      %498 = vmatpush1.bf16.msra.mxu0 0
      %499 = vmatprep.subr.bf16.mxu0 0
      %500 = vmatpush1.bf16.msra.mxu0 0
      %501 = vmatprep.subr.bf16.mxu0 0
      %502 = vmatpush1.bf16.msra.mxu0 0
      %503 = vmatprep.subr.bf16.mxu0 0
      %504 = vmatpush1.bf16.msra.mxu0 0
      %505 = vmatprep.subr.bf16.mxu0 0
      %506 = vmatpush1.bf16.msra.mxu0 0
      %507 = vmatprep.subr.bf16.mxu0 0
      %508 = vmatpush1.bf16.msra.mxu0 0
      %509 = vmatprep.subr.bf16.mxu0 0
      %510 = vmatpush1.bf16.msra.mxu0 0
      %511 = vmatprep.mubr.bf16.mxu0 0
      %512 = vmatmul.mubr.bf16.gmra.mrb[0].mxu0 %v474
      %v513 = vpop.f32.mrb[0].mxu0
      %v514 = vadd.f32 0.0, %v513
      %v515 = vpop.f32.mrb[0].mxu0
      %v516 = vpop.f32.mrb[0].mxu0
      %v517 = vadd.f32 0.0, %v516
      %v518 = vpop.f32.mrb[0].mxu0
      %519 = vdwg.mxu0
      %v520 = vadd.f32 %v459, %v514
      %v521 = vadd.f32 %v462, %v517
      %v522 = vld [vmem:[%s3] sm:$0x1]
      %v524 = vlaneseq
      %v525 = vshrl.u32 %v524, 7
      %v526 = vsub.s32 0, %v525
      %v527 = vrot.slane %v522, %v526
      %v529 = vadd.f32 %v520, %v527
      %v530 = vadd.f32 %v521, %v527
      %v531 = vmax.f32 %v529, 0.0
      %v532 = vmax.f32 %v530, 0.0
      %s533 = sld [smem:[#allocation4 + %s27]]
      %v534 = vstv %s533
      %v535 = vcvt.s32.f32 %v534
      %vm536 = vcmask 261120
      %v537 = vsel %vm536, %v531, 0.0
      %v538 = vsel %vm536, %v532, 0.0
      %v539 = vadd.f32 %v537, %v538
      %v540 = vrot.slane %v539, 4
      %v541 = vadd.f32 %v539, %v540
      %v542 = vrot.slane %v541, 2
      %v543 = vadd.f32 %v541, %v542
      %v544 = vrot.slane %v543, 1
      %v545 = vadd.f32 %v543, %v544
      %v546 = vrcp.pop %v535
      %v547 = vmul.f32 %v545, %v546
      %v548 = vld [vmem:[%s4] sm:$0xff]
      %v549 = vld [vmem:[%s4 + $0x8] sm:$0xff]
      %v550 = vld [vmem:[%s4 + $0x10] sm:$0xff]
      %v551 = vld [vmem:[%s4 + $0x18] sm:$0xff]
      %v552 = vld [vmem:[%s5] sm:$0x1]
      %v554 = vsel %vm536, %v547, 0
      %556 = vmatprep.subr.mxu0 0.0
      %557 = vmatpush1.msra.mxu0 %v548
      %558 = vmatprep.subr.mxu0 0.0
      %559 = vmatpush1.msra.mxu0 %v549
      %560 = vmatprep.subr.mxu0 0.0
      %561 = vmatpush1.msra.mxu0 %v550
      %562 = vmatprep.subr.mxu0 0.0
      %563 = vmatpush1.msra.mxu0 %v551
      %564 = vmatprep.subr.mxu0 0.0
      %565 = vmatpush1.msra.mxu0 0.0
      %566 = vmatprep.subr.mxu0 0.0
      %567 = vmatpush1.msra.mxu0 0.0
      %568 = vmatprep.subr.mxu0 0.0
      %569 = vmatpush1.msra.mxu0 0.0
      %570 = vmatprep.subr.mxu0 0.0
      %571 = vmatpush1.msra.mxu0 0.0
      %572 = vmatprep.subr.mxu0 0.0
      %573 = vmatpush1.msra.mxu0 0.0
      %574 = vmatprep.subr.mxu0 0.0
      %575 = vmatpush1.msra.mxu0 0.0
      %576 = vmatprep.subr.mxu0 0.0
      %577 = vmatpush1.msra.mxu0 0.0
      %578 = vmatprep.subr.mxu0 0.0
      %579 = vmatpush1.msra.mxu0 0.0
      %580 = vmatprep.subr.mxu0 0.0
      %581 = vmatpush1.msra.mxu0 0.0
      %582 = vmatprep.subr.mxu0 0.0
      %583 = vmatpush1.msra.mxu0 0.0
      %584 = vmatprep.subr.mxu0 0.0
      %585 = vmatpush1.msra.mxu0 0.0
      %586 = vmatprep.subr.mxu0 0.0
      %587 = vmatpush1.msra.mxu0 0.0
      %588 = vmatprep.subr.mxu0 0.0
      %589 = vmatpush1.msra.mxu0 0.0
      %590 = vmatprep.subr.mxu0 0.0
      %591 = vmatpush1.msra.mxu0 0.0
      %592 = vmatprep.subr.mxu0 0.0
      %593 = vmatpush1.msra.mxu0 0.0
      %594 = vmatprep.subr.mxu0 0.0
      %595 = vmatpush1.msra.mxu0 0.0
      %596 = vmatprep.subr.mxu0 0.0
      %597 = vmatpush1.msra.mxu0 0.0
      %598 = vmatprep.subr.mxu0 0.0
      %599 = vmatpush1.msra.mxu0 0.0
      %600 = vmatprep.subr.mxu0 0.0
      %601 = vmatpush1.msra.mxu0 0.0
      %602 = vmatprep.subr.mxu0 0.0
      %603 = vmatpush1.msra.mxu0 0.0
      %604 = vmatprep.subr.mxu0 0.0
      %605 = vmatpush1.msra.mxu0 0.0
      %606 = vmatprep.subr.mxu0 0.0
      %607 = vmatpush1.msra.mxu0 0.0
      %608 = vmatprep.subr.mxu0 0.0
      %609 = vmatpush1.msra.mxu0 0.0
      %610 = vmatprep.subr.mxu0 0.0
      %611 = vmatpush1.msra.mxu0 0.0
      %612 = vmatprep.subr.mxu0 0.0
      %613 = vmatpush1.msra.mxu0 0.0
      %614 = vmatprep.subr.mxu0 0.0
      %615 = vmatpush1.msra.mxu0 0.0
      %616 = vmatprep.subr.mxu0 0.0
      %617 = vmatpush1.msra.mxu0 0.0
      %618 = vmatprep.subr.mxu0 0.0
      %619 = vmatpush1.msra.mxu0 0.0
      %620 = vmatprep.mubr.f32.mxu0 0.0
      %621 = vmatmul.mubr.f32.gmra.mrb[0].mxu0 %v554
      %v622 = vpop.f32.mrb[0].mxu0
      %v623 = vadd.f32 %v552, %v622
      %v624 = vpop.f32.mrb[0].mxu0
      %625 = vdwg.mxu0
      %v626 = vmax.f32 %v623, 0.0
      %v627 = vld [vmem:[%s6] sm:$0xff]
      %v628 = vld [vmem:[%s6 + $0x8] sm:$0xff]
      %v629 = vld [vmem:[%s7] sm:$0x1]
      %vm630 = vcmask 130048
      %v632 = vsel %vm630, %v626, 0
      %634 = vmatprep.subr.mxu0 0.0
      %635 = vmatpush1.msra.mxu0 %v627
      %636 = vmatprep.subr.mxu0 0.0
      %637 = vmatpush1.msra.mxu0 %v628
      %638 = vmatprep.subr.mxu0 0.0
      %639 = vmatpush1.msra.mxu0 0.0
      %640 = vmatprep.subr.mxu0 0.0
      %641 = vmatpush1.msra.mxu0 0.0
      %642 = vmatprep.subr.mxu0 0.0
      %643 = vmatpush1.msra.mxu0 0.0
      %644 = vmatprep.subr.mxu0 0.0
      %645 = vmatpush1.msra.mxu0 0.0
      %646 = vmatprep.subr.mxu0 0.0
      %647 = vmatpush1.msra.mxu0 0.0
      %648 = vmatprep.subr.mxu0 0.0
      %649 = vmatpush1.msra.mxu0 0.0
      %650 = vmatprep.subr.mxu0 0.0
      %651 = vmatpush1.msra.mxu0 0.0
      %652 = vmatprep.subr.mxu0 0.0
      %653 = vmatpush1.msra.mxu0 0.0
      %654 = vmatprep.subr.mxu0 0.0
      %655 = vmatpush1.msra.mxu0 0.0
      %656 = vmatprep.subr.mxu0 0.0
      %657 = vmatpush1.msra.mxu0 0.0
      %658 = vmatprep.subr.mxu0 0.0
      %659 = vmatpush1.msra.mxu0 0.0
      %660 = vmatprep.subr.mxu0 0.0
      %661 = vmatpush1.msra.mxu0 0.0
      %662 = vmatprep.subr.mxu0 0.0
      %663 = vmatpush1.msra.mxu0 0.0
      %664 = vmatprep.subr.mxu0 0.0
      %665 = vmatpush1.msra.mxu0 0.0
      %666 = vmatprep.subr.mxu0 0.0
      %667 = vmatpush1.msra.mxu0 0.0
      %668 = vmatprep.subr.mxu0 0.0
      %669 = vmatpush1.msra.mxu0 0.0
      %670 = vmatprep.subr.mxu0 0.0
      %671 = vmatpush1.msra.mxu0 0.0
      %672 = vmatprep.subr.mxu0 0.0
      %673 = vmatpush1.msra.mxu0 0.0
      %674 = vmatprep.subr.mxu0 0.0
      %675 = vmatpush1.msra.mxu0 0.0
      %676 = vmatprep.subr.mxu0 0.0
      %677 = vmatpush1.msra.mxu0 0.0
      %678 = vmatprep.subr.mxu0 0.0
      %679 = vmatpush1.msra.mxu0 0.0
      %680 = vmatprep.subr.mxu0 0.0
      %681 = vmatpush1.msra.mxu0 0.0
      %682 = vmatprep.subr.mxu0 0.0
      %683 = vmatpush1.msra.mxu0 0.0
      %684 = vmatprep.subr.mxu0 0.0
      %685 = vmatpush1.msra.mxu0 0.0
      %686 = vmatprep.subr.mxu0 0.0
      %687 = vmatpush1.msra.mxu0 0.0
      %688 = vmatprep.subr.mxu0 0.0
      %689 = vmatpush1.msra.mxu0 0.0
      %690 = vmatprep.subr.mxu0 0.0
      %691 = vmatpush1.msra.mxu0 0.0
      %692 = vmatprep.subr.mxu0 0.0
      %693 = vmatpush1.msra.mxu0 0.0
      %694 = vmatprep.subr.mxu0 0.0
      %695 = vmatpush1.msra.mxu0 0.0
      %696 = vmatprep.subr.mxu0 0.0
      %697 = vmatpush1.msra.mxu0 0.0
      %698 = vmatprep.mubr.f32.mxu0 0.0
      %699 = vmatmul.mubr.f32.gmra.mrb[0].mxu0 %v632
      %v700 = vpop.f32.mrb[0].mxu0
      %v701 = vadd.f32 %v629, %v700
      %v702 = vpop.f32.mrb[0].mxu0
      %703 = vdwg.mxu0
      %v704 = vxor.u32 %v701, 2147483648
      %v705 = vmul.f32 %v704, 1.442695
      %v706 = vpow.pop %v705
      %v707 = vadd.f32 %v706, 1.0
      %v708 = vrcp.pop %v707
      %v709 = vmul.f32 1.0, %v708
      %v710 = vlaneseq
      %v711 = vshrl.u32 %v710, 7
      %v712 = vadd.s32 %v711, 8
      %v713 = vadd.s32 %v711, 16
      %v714 = vadd.s32 %v711, 24
      %v715 = vlaneseq
      %v716 = vand.u32 %v715, 127
      %vm717 = vcmp.eq.s32.totalorder %v711, %v716
      %vm718 = vcmp.eq.s32.totalorder %v712, %v716
      %vm719 = vcmp.eq.s32.totalorder %v713, %v716
      %vm720 = vcmp.eq.s32.totalorder %v714, %v716
      %v721 = vlaneseq
      %v722 = vshrl.u32 %v721, 7
      %v723 = vsub.s32 0, %v722
      %v724 = vrot.slane %v709, %v723
      %v725 = vsel %vm717, %v724, 0.0
      %v726 = vsel %vm718, %v724, 0.0
      %v727 = vsel %vm719, %v724, 0.0
      %v728 = vsel %vm720, %v724, 0.0
      %v729 = vsel %vm536, %v725, 0.0
      %730 = vadd.xlane.f32.xlu0 %v729
      %v731 = vpop.xlane.xlu0 %730
      %v732 = vsel %vm536, %v726, 0.0
      %733 = vadd.xlane.f32.xlu0 %v732
      %v734 = vpop.xlane.xlu0 %733
      %v735 = vsel %vm536, %v727, 0.0
      %736 = vadd.xlane.f32.xlu0 %v735
      %v737 = vpop.xlane.xlu0 %736
      %v738 = vsel %vm536, %v728, 0.0
      %739 = vadd.xlane.f32.xlu0 %v738
      %v740 = vpop.xlane.xlu0 %739
      %v741 = vld [vmem:[%s8] sm:$0xff]
      %v742 = vld [vmem:[%s8 + $0x8] sm:$0xff]
      %v743 = vld [vmem:[%s8 + $0x10] sm:$0xff]
      %v744 = vld [vmem:[%s8 + $0x18] sm:$0xff]
      %v745 = vmul.f32 %v741, %v731
      %v746 = vmul.f32 %v742, %v734
      %v747 = vmul.f32 %v743, %v737
      %v748 = vmul.f32 %v744, %v740
      %v749 = vpack.c.bf16 %v746, %v745
      %v750 = vpack.c.bf16 %v748, %v747
      %v751 = vpack.c.bf16 %v532, %v531
      %v752 = vld [vmem:[%s9] sm:$0x1]
      %v754 = vlaneseq
      %v755 = vshrl.u32 %v754, 7
      %v756 = vsub.s32 0, %v755
      %v757 = vrot.slane %v752, %v756
      %v760 = vsel %vm536, %v751, 0
      %762 = vmatprep.subr.bf16.mxu0 0
      %763 = vmatpush1.bf16.msra.mxu0 %v749
      %764 = vmatprep.subr.bf16.mxu0 0
      %765 = vmatpush1.bf16.msra.mxu0 %v750
      %766 = vmatprep.subr.bf16.mxu0 0
      %767 = vmatpush1.bf16.msra.mxu0 0
      %768 = vmatprep.subr.bf16.mxu0 0
      %769 = vmatpush1.bf16.msra.mxu0 0
      %770 = vmatprep.subr.bf16.mxu0 0
      %771 = vmatpush1.bf16.msra.mxu0 0
      %772 = vmatprep.subr.bf16.mxu0 0
      %773 = vmatpush1.bf16.msra.mxu0 0
      %774 = vmatprep.subr.bf16.mxu0 0
      %775 = vmatpush1.bf16.msra.mxu0 0
      %776 = vmatprep.subr.bf16.mxu0 0
      %777 = vmatpush1.bf16.msra.mxu0 0
      %778 = vmatprep.subr.bf16.mxu0 0
      %779 = vmatpush1.bf16.msra.mxu0 0
      %780 = vmatprep.subr.bf16.mxu0 0
      %781 = vmatpush1.bf16.msra.mxu0 0
      %782 = vmatprep.subr.bf16.mxu0 0
      %783 = vmatpush1.bf16.msra.mxu0 0
      %784 = vmatprep.subr.bf16.mxu0 0
      %785 = vmatpush1.bf16.msra.mxu0 0
      %786 = vmatprep.subr.bf16.mxu0 0
      %787 = vmatpush1.bf16.msra.mxu0 0
      %788 = vmatprep.subr.bf16.mxu0 0
      %789 = vmatpush1.bf16.msra.mxu0 0
      %790 = vmatprep.subr.bf16.mxu0 0
      %791 = vmatpush1.bf16.msra.mxu0 0
      %792 = vmatprep.subr.bf16.mxu0 0
      %793 = vmatpush1.bf16.msra.mxu0 0
      %794 = vmatprep.mubr.bf16.mxu0 0
      %795 = vmatmul.mubr.bf16.gmra.mrb[0].mxu0 %v760
      %v796 = vpop.f32.mrb[0].mxu0
      %v797 = vadd.f32 %v757, %v796
      %v798 = vpop.f32.mrb[0].mxu0
      %v799 = vpop.f32.mrb[0].mxu0
      %v800 = vadd.f32 %v757, %v799
      %v801 = vpop.f32.mrb[0].mxu0
      %802 = vdwg.mxu0
      %803 = vst.msk [vmem:[%s339] sm:$0xff] %vm341, %v797
      %804 = vst.msk [vmem:[%s339 + $0x8] sm:$0xff] %vm341, %v800
      %p805 = scmp.lt.s32.totalorder %s27, 1
      %s806 = scalar_select %p805, %s27, 1
      %s807 = smul.addr %s806, 2
      %s808 = smul.addr %s807, 8
      %s809 = scalar_lea.vmem %s10, %s808
      // Predicated region
      $region57: #{tpu_custom_call.1} parent=55 // pred_check
        %p810 = pneg %p239
      $region58: #{tpu_custom_call.1} parent=55 // pred_check_branch
        %812 = sbr.rel (%p810) target = $region60
      $region59: #{tpu_custom_call.1} parent=55 // pred_region
        _
      $region60: #{tpu_custom_call.1} parent=55 // pred_fallthru
        _
    $region56: #{tpu_custom_call.1} parent=5 // pred_fallthru
      _
    %p813 = scmp.le.s32.totalorder 2, %s22
    // Predicated region
    $region61: #{tpu_custom_call.1} parent=5 // pred_check
      %p814 = pneg %p813
    $region62: #{tpu_custom_call.1} parent=5 // pred_check_branch
      %816 = sbr.rel (%p814) target = $region64
    $region63: #{tpu_custom_call.1} parent=5 // pred_region
      %s817 = ssub.s32 %s22, 2
      // Predicated region
      $region65: #{tpu_custom_call.1} parent=63 // pred_check
        %p818 = pneg %p245
      $region66: #{tpu_custom_call.1} parent=63 // pred_check_branch
        %820 = sbr.rel (%p818) target = $region68
      $region67: #{tpu_custom_call.1} parent=63 // pred_region
        %p821 = scmp.lt.s32.totalorder %s28, 1
        %s822 = scalar_select %p821, %s28, 1
        %s823 = smul.addr %s822, 2
        %s824 = smul.addr %s823, 8
        %s825 = scalar_lea.vmem %s10, %s824
      $region68: #{tpu_custom_call.1} parent=63 // pred_fallthru
        _
    $region64: #{tpu_custom_call.1} parent=5 // pred_fallthru
      _
  $region6: #{tpu_custom_call.1} parent=0 // loop_footer
    %s26 = sadd.s32 1, %s22
  $region7: #{tpu_custom_call.1} parent=0 // loop_footer_branch
    %21 = sbr.rel target = $region3
  $region8: #{tpu_custom_call.1} parent=0 // loop_exit
    _

</llo_original>
